<compile_context>
chip_gen: v6e
topology: v6e:2x2x1
jax: 0.10.0
libtpu: 0.0.40
codegen_flags: <defaults>
</compile_context>

<pallas_src>
import functools

import jax
import jax.numpy as jnp
from jax import lax
from jax.experimental import pallas as pl
from jax.experimental.pallas import tpu as pltpu


def _round_up(x, m):
    return (x + m - 1) // m * m


def gru_kernel(x_ref, wih_ref, whh_ref, bih_ref, bhn_ref, fcw_ref, fcb_ref,
               out_ref, h_sc, gi_sc):
    """One time-chunk of the GRU recurrence (+ FC/sigmoid epilogue at the end).

    x_ref   : (TS*Bp, E)  bf16  time-major embedded tokens, rows = s*Bp + b
    wih_ref : (E, GW)     bf16  input->hidden weights, packed [r|z|n|pad]
    whh_ref : (H, GW)     bf16  hidden->hidden weights, packed [r|z|n|pad]
    bih_ref : (1, GW)     f32   b_ih with b_hh's r/z columns folded in
    bhn_ref : (1, H)      f32   b_hh n-column only
    fcw_ref : (H, 1)      f32   final linear weight (transposed)
    fcb_ref : (1, 1)      f32
    out_ref : (Bp, 1)     f32   sigmoid(logits), written on the last chunk
    h_sc    : (Bp, H)     f32   hidden state, persists across grid steps
    gi_sc   : (TS*Bp, GW) f32   hoisted input projection for this chunk
    """
    Bp, H = h_sc.shape
    TS = x_ref.shape[0] // Bp
    t_blk = pl.program_id(0)

    @pl.when(t_blk == 0)
    def _init():
        h_sc[...] = jnp.zeros_like(h_sc)

    # ---- Hoisted input projection: one MXU matmul per time chunk ----
    gi_sc[...] = jnp.dot(x_ref[...], wih_ref[...],
                         preferred_element_type=jnp.float32) + bih_ref[...]

    # ---- Recurrence: only h @ Whh (width GW=128) stays on the serial path ----
    w_hh = whh_ref[...]                                    # bf16, hoisted
    b_hn = jnp.broadcast_to(bhn_ref[...], (Bp, H))         # hoisted broadcast

    def step(t, h):
        row = pl.multiple_of(t * Bp, Bp)                   # sublane-aligned
        gi_t = gi_sc[pl.ds(row, Bp), :]                    # (Bp, GW) f32
        g_h = jnp.dot(h.astype(jnp.bfloat16), w_hh,
                      preferred_element_type=jnp.float32)  # (Bp, GW) f32
        # Packed-gate extraction via static lane slices of the 128-lane block.
        rz = jax.nn.sigmoid(gi_t[:, :2 * H] + g_h[:, :2 * H])
        r = rz[:, :H]
        z = rz[:, H:]
        n = jnp.tanh(gi_t[:, 2 * H:3 * H] + r * (g_h[:, 2 * H:3 * H] + b_hn))
        return n + z * (h - n)                             # = (1-z)*n + z*h

    h_sc[...] = lax.fori_loop(0, TS, step, h_sc[...], unroll=min(TS, 8))

    # ---- Epilogue: FC + sigmoid on the final hidden state ----
    @pl.when(t_blk == pl.num_programs(0) - 1)
    def _finish():
        logit = jnp.dot(h_sc[...], fcw_ref[...],
                        preferred_element_type=jnp.float32) + fcb_ref[...]
        out_ref[...] = jax.nn.sigmoid(logit)


def spam_gru_forward(token_ids, params, vocab_size, *, block_seq=None):
    """Full forward pass of OptimizedSpamGRU (inference)."""
    emb = params["embedding"]            # (V, E)
    w_ih_t = params["w_ih_t"]            # (E, 3H)
    w_hh_t = params["w_hh_t"]            # (H, 3H)
    b_ih = params["b_ih"]                # (1, 3H)
    b_hh = params["b_hh"]                # (1, 3H)
    fc_w_t = params["fc_w_t"]            # (H, 1)
    fc_b = params["fc_b"]                # (1, 1)

    B, S = token_ids.shape
    E = emb.shape[1]
    H = w_hh_t.shape[0]
    G3 = 3 * H
    GW = _round_up(G3, 128)              # packed gate width (one lane block)
    assert G3 <= GW, "gate packing assumes 3H <= padded gate width"
    # NOTE: batch is only rounded up to the 8-sublane minimum here; with a
    # large real batch, raising Bp (>=128) fills the MXU M dimension and is
    # the biggest throughput lever.
    Bp = _round_up(max(B, 8), 8)
    if block_seq is None:
        block_seq = S
        for d in range(min(S, 64), 0, -1):   # bounded chunk size for VMEM/unroll
            if S % d == 0:
                block_seq = d
                break
    assert S % block_seq == 0, "block_seq must divide S"
    num_chunks = S // block_seq

    # --- Glue: clamp + pad token ids (cheap), single time-major bf16 gather ---
    ids = jnp.clip(token_ids, 0, vocab_size - 1).astype(jnp.int32)
    ids = jnp.pad(ids, ((0, Bp - B), (0, 0)))                 # (Bp, S)
    # TODO(synk): nn.Dropout is identity in eval mode; training dropout not implemented.
    # TODO(synk): the embedding gather itself still runs in XLA; a fully fused
    # in-kernel gather (scalar-prefetch ids + dynamic row gather) is not used.
    x = jnp.take(emb.astype(jnp.bfloat16), ids.T, axis=0)     # (S, Bp, E) bf16
    x = x.reshape(S * Bp, E)                                  # rows = s*Bp + b (free)

    # --- Pack gates [r|z|n] into one lane block; fold b_hh r/z into b_ih ---
    pad_g = ((0, 0), (0, GW - G3))
    wih = jnp.pad(w_ih_t, pad_g).astype(jnp.bfloat16)                   # (E, GW)
    whh = jnp.pad(w_hh_t, pad_g).astype(jnp.bfloat16)                   # (H, GW)
    b_fold = b_ih.astype(jnp.float32) + jnp.concatenate(
        [b_hh[:, :2 * H].astype(jnp.float32),
         jnp.zeros((1, H), jnp.float32)], axis=1)
    bih = jnp.pad(b_fold, pad_g)                                        # (1, GW)
    bhn = b_hh[:, 2 * H:].astype(jnp.float32)                           # (1, H)
    fcw = fc_w_t.astype(jnp.float32)                                    # (H, 1)
    fcb = fc_b.astype(jnp.float32)                                      # (1, 1)

    def const_spec(shape):
        return pl.BlockSpec(shape, lambda t: (0,) * len(shape))

    out = pl.pallas_call(
        gru_kernel,
        out_shape=jax.ShapeDtypeStruct((Bp, 1), jnp.float32),
        grid_spec=pltpu.PrefetchScalarGridSpec(
            num_scalar_prefetch=0,
            grid=(num_chunks,),
            in_specs=[
                # x: one time chunk per grid step; auto double-buffered.
                pl.BlockSpec((block_seq * Bp, E), lambda t: (t, 0)),
                const_spec(wih.shape),
                const_spec(whh.shape),
                const_spec(bih.shape),
                const_spec(bhn.shape),
                const_spec(fcw.shape),
                const_spec(fcb.shape),
            ],
            out_specs=pl.BlockSpec((Bp, 1), lambda t: (0, 0)),
            scratch_shapes=[
                pltpu.VMEM((Bp, H), jnp.float32),                  # hidden state
                pltpu.VMEM((block_seq * Bp, GW), jnp.float32),     # hoisted gi
            ],
        ),
        # TODO(synk): on v7x (2 TensorCores) a leading "parallel" batch-tile
        # grid axis would shard large batches across cores; omitted here since
        # the demo batch fits in a single 8-row tile.
        compiler_params=pltpu.CompilerParams(
            dimension_semantics=("arbitrary",),   # time axis is sequential
        ),
    )(x, wih, whh, bih, bhn, fcw, fcb)
    return out[:B]


def reference_forward(token_ids, params, vocab_size):
    """Pure-JAX f32 reference matching the PyTorch module (eval mode)."""
    H = params["w_hh_t"].shape[0]
    ids = jnp.clip(token_ids, 0, vocab_size - 1)
    x = jnp.take(params["embedding"], ids, axis=0)        # (B, S, E) f32
    wih, whh = params["w_ih_t"], params["w_hh_t"]
    bih, bhh = params["b_ih"], params["b_hh"]

    def step(h, xt):
        gi = xt @ wih + bih
        gh = h @ whh + bhh
        r = jax.nn.sigmoid(gi[:, :H] + gh[:, :H])
        z = jax.nn.sigmoid(gi[:, H:2 * H] + gh[:, H:2 * H])
        n = jnp.tanh(gi[:, 2 * H:] + r * gh[:, 2 * H:])
        return (1.0 - z) * n + z * h, None

    h0 = jnp.zeros((x.shape[0], H), jnp.float32)
    h, _ = lax.scan(step, h0, jnp.swapaxes(x, 0, 1))
    logit = h @ params["fc_w_t"] + params["fc_b"]
    return jax.nn.sigmoid(logit)


def init_params(key, vocab_size, embed_size=32, hidden_size=32):
    """Deterministic parameter init matching PyTorch module shapes."""
    k_emb, k_wih, k_whh, k_bih, k_bhh, k_fcw, k_fcb = jax.random.split(key, 7)

    emb = jax.random.normal(k_emb, (vocab_size, embed_size), jnp.float32)
    emb = emb.at[1].set(0.0)  # padding_idx=1 row is zero-initialized

    bound = 1.0 / jnp.sqrt(hidden_size).astype(jnp.float32)
    u = lambda k, shape: jax.random.uniform(k, shape, jnp.float32, -bound, bound)

    # PyTorch stores weight_ih_l0 as (3H, E); we keep the transposed (E, 3H).
    w_ih_t = u(k_wih, (embed_size, 3 * hidden_size))
    w_hh_t = u(k_whh, (hidden_size, 3 * hidden_size))
    b_ih = u(k_bih, (1, 3 * hidden_size))
    b_hh = u(k_bhh, (1, 3 * hidden_size))

    fc_w_t = jax.random.uniform(k_fcw, (hidden_size, 1), jnp.float32,
                                -bound, bound)
    fc_b = jax.random.uniform(k_fcb, (1, 1), jnp.float32, -bound, bound)

    return {
        "embedding": emb,
        "w_ih_t": w_ih_t,
        "w_hh_t": w_hh_t,
        "b_ih": b_ih,
        "b_hh": b_hh,
        "fc_w_t": fc_w_t,
        "fc_b": fc_b,
    }


if __name__ == "__main__":
    vocab_size = 100
    embed_size = 32
    hidden_size = 32
    batch = 2
    seq_len = 8

    key = jax.random.PRNGKey(0)
    k_params, k_tokens = jax.random.split(key)

    params = init_params(k_params, vocab_size, embed_size, hidden_size)
    # Token ids deliberately include out-of-range values to exercise the clamp.
    token_ids = jax.random.randint(k_tokens, (batch, seq_len), -5,
                                   vocab_size + 5, dtype=jnp.int32)

    fwd = jax.jit(functools.partial(spam_gru_forward,
                                    vocab_size=vocab_size, block_seq=4))
    out = fwd(token_ids, params)
    out = jax.block_until_ready(out)

    ref = reference_forward(token_ids, params, vocab_size)

    assert out.shape == (batch, 1)
    assert bool(jnp.all((out >= 0.0) & (out <= 1.0)))
    # bf16 matmul inputs / f32 gate math -> small, bounded drift vs f32 reference.
    assert bool(jnp.allclose(out, ref, atol=5e-2)), (out, ref)
    print("KERNEL_OK")
</pallas_src>

<mosaic_0001>
module attributes {stable_mosaic.version = 11 : i64} {
  func.func @gru_kernel(%arg0: i32, %arg1: memref<32x32xbf16, #tpu.memory_space<vmem>>, %arg2: memref<32x128xbf16, #tpu.memory_space<vmem>>, %arg3: memref<32x128xbf16, #tpu.memory_space<vmem>>, %arg4: memref<1x128xf32, #tpu.memory_space<vmem>>, %arg5: memref<1x32xf32, #tpu.memory_space<vmem>>, %arg6: memref<32x1xf32, #tpu.memory_space<vmem>>, %arg7: memref<1x1xf32, #tpu.memory_space<vmem>>, %arg8: memref<8x1xf32, #tpu.memory_space<vmem>>, %arg9: memref<8x32xf32, #tpu.memory_space<vmem>>, %arg10: memref<32x128xf32, #tpu.memory_space<vmem>>) attributes {dimension_semantics = [#tpu.dimension_semantics<arbitrary>], iteration_bounds = array<i64: 2>, scalar_prefetch = 0 : i64, scratch_operands = 2 : i64, tpu.core_type = #tpu.core_type<tc>, window_params = [{transform_indices = @transform_0, window_bounds = array<i64: 32, 32>}, {pipeline_mode = #tpu.pipeline_mode<synchronous>, transform_indices = @transform_1, window_bounds = array<i64: 32, 128>}, {pipeline_mode = #tpu.pipeline_mode<synchronous>, transform_indices = @transform_2, window_bounds = array<i64: 32, 128>}, {pipeline_mode = #tpu.pipeline_mode<synchronous>, transform_indices = @transform_3, window_bounds = array<i64: 1, 128>}, {pipeline_mode = #tpu.pipeline_mode<synchronous>, transform_indices = @transform_4, window_bounds = array<i64: 1, 32>}, {pipeline_mode = #tpu.pipeline_mode<synchronous>, transform_indices = @transform_5, window_bounds = array<i64: 32, 1>}, {pipeline_mode = #tpu.pipeline_mode<synchronous>, transform_indices = @transform_6, window_bounds = array<i64: 1, 1>}, {pipeline_mode = #tpu.pipeline_mode<synchronous>, transform_indices = @transform_7, window_bounds = array<i64: 8, 1>}]} {
    %c0_i32 = arith.constant 0 : i32
    %0 = arith.cmpi eq, %arg0, %c0_i32 : i32
    %1 = arith.extui %0 : i1 to i32
    %c0_i32_0 = arith.constant 0 : i32
    %2 = arith.cmpi ne, %1, %c0_i32_0 : i32
    scf.if %2 {
      %cst_34 = arith.constant 0.000000e+00 : f32
      %119 = vector.broadcast %cst_34 : f32 to vector<8x32xf32>
      %c0_35 = arith.constant 0 : index
      %c0_36 = arith.constant 0 : index
      %120 = vector.load %arg9[%c0_35, %c0_36] : memref<8x32xf32, #tpu.memory_space<vmem>>, vector<8x32xf32>
      tpu.vector_store %arg9[%c0_35, %c0_36], %119 {strides = array<i32>} : memref<8x32xf32, #tpu.memory_space<vmem>>, vector<8x32xf32>,
    } else {
    }
    %c0 = arith.constant 0 : index
    %c0_1 = arith.constant 0 : index
    %3 = vector.load %arg1[%c0, %c0_1] : memref<32x32xbf16, #tpu.memory_space<vmem>>, vector<32x32xbf16>
    %c0_2 = arith.constant 0 : index
    %c0_3 = arith.constant 0 : index
    %4 = vector.load %arg2[%c0_2, %c0_3] : memref<32x128xbf16, #tpu.memory_space<vmem>>, vector<32x128xbf16>
    %cst = arith.constant dense<0.000000e+00> : vector<32x128xf32>
    %5 = tpu.matmul %3, %4, %cst {dimension_numbers = #tpu.dot_dimension_numbers<[1], [0], [0], [1], [0, 0, 1, 1], [], []>} : vector<32x32xbf16>, vector<32x128xbf16>, vector<32x128xf32> -> vector<32x128xf32>
    %c0_4 = arith.constant 0 : index
    %c0_5 = arith.constant 0 : index
    %6 = vector.load %arg4[%c0_4, %c0_5] : memref<1x128xf32, #tpu.memory_space<vmem>>, vector<1x128xf32>
    %7 = vector.broadcast %6 : vector<1x128xf32> to vector<32x128xf32>
    %8 = arith.addf %5, %7 : vector<32x128xf32>
    %c0_6 = arith.constant 0 : index
    %c0_7 = arith.constant 0 : index
    %9 = vector.load %arg10[%c0_6, %c0_7] : memref<32x128xf32, #tpu.memory_space<vmem>>, vector<32x128xf32>
    tpu.vector_store %arg10[%c0_6, %c0_7], %8 {strides = array<i32>} : memref<32x128xf32, #tpu.memory_space<vmem>>, vector<32x128xf32>,
    %c0_8 = arith.constant 0 : index
    %c0_9 = arith.constant 0 : index
    %10 = vector.load %arg3[%c0_8, %c0_9] : memref<32x128xbf16, #tpu.memory_space<vmem>>, vector<32x128xbf16>
    %c0_10 = arith.constant 0 : index
    %c0_11 = arith.constant 0 : index
    %11 = vector.load %arg5[%c0_10, %c0_11] : memref<1x32xf32, #tpu.memory_space<vmem>>, vector<1x32xf32>
    %12 = vector.shape_cast %11 : vector<1x32xf32> to vector<1x32xf32>
    %13 = vector.broadcast %12 : vector<1x32xf32> to vector<8x32xf32>
    %c0_12 = arith.constant 0 : index
    %c0_13 = arith.constant 0 : index
    %14 = vector.load %arg9[%c0_12, %c0_13] : memref<8x32xf32, #tpu.memory_space<vmem>>, vector<8x32xf32>
    %c0_i32_14 = arith.constant 0 : i32
    %c8_i32 = arith.constant 8 : i32
    %15 = arith.muli %c0_i32_14, %c8_i32 : i32
    %16 = tpu.assume_multiple %15, 8 : i32
    %17 = arith.index_cast %16 : i32 to index
    %c0_15 = arith.constant 0 : index
    %18 = vector.load %arg10[%17, %c0_15] : memref<32x128xf32, #tpu.memory_space<vmem>>, vector<8x128xf32>
    %19 = arith.truncf %14 : vector<8x32xf32> to vector<8x32xbf16>
    %cst_16 = arith.constant dense<0.000000e+00> : vector<8x128xf32>
    %20 = tpu.matmul %19, %10, %cst_16 {dimension_numbers = #tpu.dot_dimension_numbers<[1], [0], [0], [1], [0, 0, 1, 1], [], []>} : vector<8x32xbf16>, vector<32x128xbf16>, vector<8x128xf32> -> vector<8x128xf32>
    %21 = vector.extract_strided_slice %18 {offsets = [0, 0], sizes = [8, 64], strides = [1, 1]} : vector<8x128xf32> to vector<8x64xf32>
    %22 = vector.extract_strided_slice %20 {offsets = [0, 0], sizes = [8, 64], strides = [1, 1]} : vector<8x128xf32> to vector<8x64xf32>
    %23 = arith.addf %21, %22 : vector<8x64xf32>
    %24 = arith.negf %23 : vector<8x64xf32>
    %25 = math.exp %24 : vector<8x64xf32>
    %cst_17 = arith.constant 1.000000e+00 : f32
    %26 = vector.broadcast %cst_17 : f32 to vector<8x64xf32>
    %27 = arith.addf %26, %25 : vector<8x64xf32>
    %28 = arith.divf %26, %27 : vector<8x64xf32>
    %29 = vector.extract_strided_slice %28 {offsets = [0, 0], sizes = [8, 32], strides = [1, 1]} : vector<8x64xf32> to vector<8x32xf32>
    %30 = vector.extract_strided_slice %28 {offsets = [0, 32], sizes = [8, 32], strides = [1, 1]} : vector<8x64xf32> to vector<8x32xf32>
    %31 = vector.extract_strided_slice %18 {offsets = [0, 64], sizes = [8, 32], strides = [1, 1]} : vector<8x128xf32> to vector<8x32xf32>
    %32 = vector.extract_strided_slice %20 {offsets = [0, 64], sizes = [8, 32], strides = [1, 1]} : vector<8x128xf32> to vector<8x32xf32>
    %33 = arith.addf %32, %13 : vector<8x32xf32>
    %34 = arith.mulf %29, %33 : vector<8x32xf32>
    %35 = arith.addf %31, %34 : vector<8x32xf32>
    %36 = math.tanh %35 : vector<8x32xf32>
    %37 = arith.subf %14, %36 : vector<8x32xf32>
    %38 = arith.mulf %30, %37 : vector<8x32xf32>
    %39 = arith.addf %36, %38 : vector<8x32xf32>
    %c1_i32 = arith.constant 1 : i32
    %c8_i32_18 = arith.constant 8 : i32
    %40 = arith.muli %c1_i32, %c8_i32_18 : i32
    %41 = tpu.assume_multiple %40, 8 : i32
    %42 = arith.index_cast %41 : i32 to index
    %c0_19 = arith.constant 0 : index
    %43 = vector.load %arg10[%42, %c0_19] : memref<32x128xf32, #tpu.memory_space<vmem>>, vector<8x128xf32>
    %44 = arith.truncf %39 : vector<8x32xf32> to vector<8x32xbf16>
    %cst_20 = arith.constant dense<0.000000e+00> : vector<8x128xf32>
    %45 = tpu.matmul %44, %10, %cst_20 {dimension_numbers = #tpu.dot_dimension_numbers<[1], [0], [0], [1], [0, 0, 1, 1], [], []>} : vector<8x32xbf16>, vector<32x128xbf16>, vector<8x128xf32> -> vector<8x128xf32>
    %46 = vector.extract_strided_slice %43 {offsets = [0, 0], sizes = [8, 64], strides = [1, 1]} : vector<8x128xf32> to vector<8x64xf32>
    %47 = vector.extract_strided_slice %45 {offsets = [0, 0], sizes = [8, 64], strides = [1, 1]} : vector<8x128xf32> to vector<8x64xf32>
    %48 = arith.addf %46, %47 : vector<8x64xf32>
    %49 = arith.negf %48 : vector<8x64xf32>
    %50 = math.exp %49 : vector<8x64xf32>
    %cst_21 = arith.constant 1.000000e+00 : f32
    %51 = vector.broadcast %cst_21 : f32 to vector<8x64xf32>
    %52 = arith.addf %51, %50 : vector<8x64xf32>
    %53 = arith.divf %51, %52 : vector<8x64xf32>
    %54 = vector.extract_strided_slice %53 {offsets = [0, 0], sizes = [8, 32], strides = [1, 1]} : vector<8x64xf32> to vector<8x32xf32>
    %55 = vector.extract_strided_slice %53 {offsets = [0, 32], sizes = [8, 32], strides = [1, 1]} : vector<8x64xf32> to vector<8x32xf32>
    %56 = vector.extract_strided_slice %43 {offsets = [0, 64], sizes = [8, 32], strides = [1, 1]} : vector<8x128xf32> to vector<8x32xf32>
    %57 = vector.extract_strided_slice %45 {offsets = [0, 64], sizes = [8, 32], strides = [1, 1]} : vector<8x128xf32> to vector<8x32xf32>
    %58 = arith.addf %57, %13 : vector<8x32xf32>
    %59 = arith.mulf %54, %58 : vector<8x32xf32>
    %60 = arith.addf %56, %59 : vector<8x32xf32>
    %61 = math.tanh %60 : vector<8x32xf32>
    %62 = arith.subf %39, %61 : vector<8x32xf32>
    %63 = arith.mulf %55, %62 : vector<8x32xf32>
    %64 = arith.addf %61, %63 : vector<8x32xf32>
    %c2_i32 = arith.constant 2 : i32
    %c8_i32_22 = arith.constant 8 : i32
    %65 = arith.muli %c2_i32, %c8_i32_22 : i32
    %66 = tpu.assume_multiple %65, 8 : i32
    %67 = arith.index_cast %66 : i32 to index
    %c0_23 = arith.constant 0 : index
    %68 = vector.load %arg10[%67, %c0_23] : memref<32x128xf32, #tpu.memory_space<vmem>>, vector<8x128xf32>
    %69 = arith.truncf %64 : vector<8x32xf32> to vector<8x32xbf16>
    %cst_24 = arith.constant dense<0.000000e+00> : vector<8x128xf32>
    %70 = tpu.matmul %69, %10, %cst_24 {dimension_numbers = #tpu.dot_dimension_numbers<[1], [0], [0], [1], [0, 0, 1, 1], [], []>} : vector<8x32xbf16>, vector<32x128xbf16>, vector<8x128xf32> -> vector<8x128xf32>
    %71 = vector.extract_strided_slice %68 {offsets = [0, 0], sizes = [8, 64], strides = [1, 1]} : vector<8x128xf32> to vector<8x64xf32>
    %72 = vector.extract_strided_slice %70 {offsets = [0, 0], sizes = [8, 64], strides = [1, 1]} : vector<8x128xf32> to vector<8x64xf32>
    %73 = arith.addf %71, %72 : vector<8x64xf32>
    %74 = arith.negf %73 : vector<8x64xf32>
    %75 = math.exp %74 : vector<8x64xf32>
    %cst_25 = arith.constant 1.000000e+00 : f32
    %76 = vector.broadcast %cst_25 : f32 to vector<8x64xf32>
    %77 = arith.addf %76, %75 : vector<8x64xf32>
    %78 = arith.divf %76, %77 : vector<8x64xf32>
    %79 = vector.extract_strided_slice %78 {offsets = [0, 0], sizes = [8, 32], strides = [1, 1]} : vector<8x64xf32> to vector<8x32xf32>
    %80 = vector.extract_strided_slice %78 {offsets = [0, 32], sizes = [8, 32], strides = [1, 1]} : vector<8x64xf32> to vector<8x32xf32>
    %81 = vector.extract_strided_slice %68 {offsets = [0, 64], sizes = [8, 32], strides = [1, 1]} : vector<8x128xf32> to vector<8x32xf32>
    %82 = vector.extract_strided_slice %70 {offsets = [0, 64], sizes = [8, 32], strides = [1, 1]} : vector<8x128xf32> to vector<8x32xf32>
    %83 = arith.addf %82, %13 : vector<8x32xf32>
    %84 = arith.mulf %79, %83 : vector<8x32xf32>
    %85 = arith.addf %81, %84 : vector<8x32xf32>
    %86 = math.tanh %85 : vector<8x32xf32>
    %87 = arith.subf %64, %86 : vector<8x32xf32>
    %88 = arith.mulf %80, %87 : vector<8x32xf32>
    %89 = arith.addf %86, %88 : vector<8x32xf32>
    %c3_i32 = arith.constant 3 : i32
    %c8_i32_26 = arith.constant 8 : i32
    %90 = arith.muli %c3_i32, %c8_i32_26 : i32
    %91 = tpu.assume_multiple %90, 8 : i32
    %92 = arith.index_cast %91 : i32 to index
    %c0_27 = arith.constant 0 : index
    %93 = vector.load %arg10[%92, %c0_27] : memref<32x128xf32, #tpu.memory_space<vmem>>, vector<8x128xf32>
    %94 = arith.truncf %89 : vector<8x32xf32> to vector<8x32xbf16>
    %cst_28 = arith.constant dense<0.000000e+00> : vector<8x128xf32>
    %95 = tpu.matmul %94, %10, %cst_28 {dimension_numbers = #tpu.dot_dimension_numbers<[1], [0], [0], [1], [0, 0, 1, 1], [], []>} : vector<8x32xbf16>, vector<32x128xbf16>, vector<8x128xf32> -> vector<8x128xf32>
    %96 = vector.extract_strided_slice %93 {offsets = [0, 0], sizes = [8, 64], strides = [1, 1]} : vector<8x128xf32> to vector<8x64xf32>
    %97 = vector.extract_strided_slice %95 {offsets = [0, 0], sizes = [8, 64], strides = [1, 1]} : vector<8x128xf32> to vector<8x64xf32>
    %98 = arith.addf %96, %97 : vector<8x64xf32>
    %99 = arith.negf %98 : vector<8x64xf32>
    %100 = math.exp %99 : vector<8x64xf32>
    %cst_29 = arith.constant 1.000000e+00 : f32
    %101 = vector.broadcast %cst_29 : f32 to vector<8x64xf32>
    %102 = arith.addf %101, %100 : vector<8x64xf32>
    %103 = arith.divf %101, %102 : vector<8x64xf32>
    %104 = vector.extract_strided_slice %103 {offsets = [0, 0], sizes = [8, 32], strides = [1, 1]} : vector<8x64xf32> to vector<8x32xf32>
    %105 = vector.extract_strided_slice %103 {offsets = [0, 32], sizes = [8, 32], strides = [1, 1]} : vector<8x64xf32> to vector<8x32xf32>
    %106 = vector.extract_strided_slice %93 {offsets = [0, 64], sizes = [8, 32], strides = [1, 1]} : vector<8x128xf32> to vector<8x32xf32>
    %107 = vector.extract_strided_slice %95 {offsets = [0, 64], sizes = [8, 32], strides = [1, 1]} : vector<8x128xf32> to vector<8x32xf32>
    %108 = arith.addf %107, %13 : vector<8x32xf32>
    %109 = arith.mulf %104, %108 : vector<8x32xf32>
    %110 = arith.addf %106, %109 : vector<8x32xf32>
    %111 = math.tanh %110 : vector<8x32xf32>
    %112 = arith.subf %89, %111 : vector<8x32xf32>
    %113 = arith.mulf %105, %112 : vector<8x32xf32>
    %114 = arith.addf %111, %113 : vector<8x32xf32>
    %c4_i32 = arith.constant 4 : i32
    %c0_30 = arith.constant 0 : index
    %c0_31 = arith.constant 0 : index
    %115 = vector.load %arg9[%c0_30, %c0_31] : memref<8x32xf32, #tpu.memory_space<vmem>>, vector<8x32xf32>
    tpu.vector_store %arg9[%c0_30, %c0_31], %114 {strides = array<i32>} : memref<8x32xf32, #tpu.memory_space<vmem>>, vector<8x32xf32>,
    %c1_i32_32 = arith.constant 1 : i32
    %116 = arith.cmpi eq, %arg0, %c1_i32_32 : i32
    %117 = arith.extui %116 : i1 to i32
    %c0_i32_33 = arith.constant 0 : i32
    %118 = arith.cmpi ne, %117, %c0_i32_33 : i32
    scf.if %118 {
      %c0_34 = arith.constant 0 : index
      %c0_35 = arith.constant 0 : index
      %119 = vector.load %arg9[%c0_34, %c0_35] : memref<8x32xf32, #tpu.memory_space<vmem>>, vector<8x32xf32>
      %c0_36 = arith.constant 0 : index
      %c0_37 = arith.constant 0 : index
      %120 = vector.load %arg6[%c0_36, %c0_37] : memref<32x1xf32, #tpu.memory_space<vmem>>, vector<32x1xf32>
      %cst_38 = arith.constant dense<0.000000e+00> : vector<8x1xf32>
      %121 = tpu.matmul %119, %120, %cst_38 {dimension_numbers = #tpu.dot_dimension_numbers<[1], [0], [0], [1], [0, 0, 1, 1], [], []>} : vector<8x32xf32>, vector<32x1xf32>, vector<8x1xf32> -> vector<8x1xf32>
      %c0_39 = arith.constant 0 : index
      %c0_40 = arith.constant 0 : index
      %122 = vector.load %arg7[%c0_39, %c0_40] : memref<1x1xf32, #tpu.memory_space<vmem>>, vector<1x1xf32>
      %123 = vector.broadcast %122 : vector<1x1xf32> to vector<8x1xf32>
      %124 = arith.addf %121, %123 : vector<8x1xf32>
      %125 = arith.negf %124 : vector<8x1xf32>
      %126 = math.exp %125 : vector<8x1xf32>
      %cst_41 = arith.constant 1.000000e+00 : f32
      %127 = vector.broadcast %cst_41 : f32 to vector<8x1xf32>
      %128 = arith.addf %127, %126 : vector<8x1xf32>
      %129 = arith.divf %127, %128 : vector<8x1xf32>
      %c0_42 = arith.constant 0 : index
      %c0_43 = arith.constant 0 : index
      %130 = vector.load %arg8[%c0_42, %c0_43] : memref<8x1xf32, #tpu.memory_space<vmem>>, vector<8x1xf32>
      tpu.vector_store %arg8[%c0_42, %c0_43], %129 {strides = array<i32>} : memref<8x1xf32, #tpu.memory_space<vmem>>, vector<8x1xf32>,
    } else {
    }
    return
  }
  func.func @transform_0(%arg0: i32) -> (i32, i32) {
    %c0_i32 = arith.constant 0 : i32
    %c0_i32_0 = arith.constant 0 : i32
    return %arg0, %c0_i32 : i32, i32
  }
  func.func @transform_1(%arg0: i32) -> (i32, i32) {
    %c0_i32 = arith.constant 0 : i32
    %c0_i32_0 = arith.constant 0 : i32
    %c0_i32_1 = arith.constant 0 : i32
    return %c0_i32, %c0_i32_0 : i32, i32
  }
  func.func @transform_2(%arg0: i32) -> (i32, i32) {
    %c0_i32 = arith.constant 0 : i32
    %c0_i32_0 = arith.constant 0 : i32
    %c0_i32_1 = arith.constant 0 : i32
    return %c0_i32, %c0_i32_0 : i32, i32
  }
  func.func @transform_3(%arg0: i32) -> (i32, i32) {
    %c0_i32 = arith.constant 0 : i32
    %c0_i32_0 = arith.constant 0 : i32
    %c0_i32_1 = arith.constant 0 : i32
    return %c0_i32, %c0_i32_0 : i32, i32
  }
  func.func @transform_4(%arg0: i32) -> (i32, i32) {
    %c0_i32 = arith.constant 0 : i32
    %c0_i32_0 = arith.constant 0 : i32
    %c0_i32_1 = arith.constant 0 : i32
    return %c0_i32, %c0_i32_0 : i32, i32
  }
  func.func @transform_5(%arg0: i32) -> (i32, i32) {
    %c0_i32 = arith.constant 0 : i32
    %c0_i32_0 = arith.constant 0 : i32
    %c0_i32_1 = arith.constant 0 : i32
    return %c0_i32, %c0_i32_0 : i32, i32
  }
  func.func @transform_6(%arg0: i32) -> (i32, i32) {
    %c0_i32 = arith.constant 0 : i32
    %c0_i32_0 = arith.constant 0 : i32
    %c0_i32_1 = arith.constant 0 : i32
    return %c0_i32, %c0_i32_0 : i32, i32
  }
  func.func @transform_7(%arg0: i32) -> (i32, i32) {
    %c0_i32 = arith.constant 0 : i32
    %c0_i32_0 = arith.constant 0 : i32
    %c0_i32_1 = arith.constant 0 : i32
    return %c0_i32, %c0_i32_0 : i32, i32
  }
}

</mosaic_0001>

<llo_original>
// kernel: spam_gru_forward.1
$region0: #{spam_gru_forward.1}
  #allocation0 [shape = 'u32[]', space=smem, size = 0x4, offset = 0x4, fixed_abs, tag = 'smem constant byte address 0x4 - core index']
  #allocation1 [shape = 'u32[144,128]{1,0:T(1,128)}', space=vmem, size = 0x12000, scoped, tag = 'internal scratch']
  #allocation2 [shape = 'f32[8,32]{1,0:T(8,128)}', space=vmem, size = 0x1000, scoped, tag = 'scratch operand']
  #allocation3 [shape = 'f32[32,128]{1,0:T(8,128)}', space=vmem, size = 0x4000, scoped, tag = 'scratch operand']
  #allocation4 [shape = 'f32[1,1]{1,0:T(1,128)S(1)}', space=vmem, size = 0x200, scoped, tag = 'scoped memory for spam_gru_forward.1']
  %s0 = inlined_call_operand.vmem [shape: bf16[64,32], index: 0, kind: input, shape index: {}]
  %s1 = inlined_call_operand.vmem [shape: bf16[32,128], index: 1, kind: input, shape index: {}]
  %s2 = inlined_call_operand.vmem [shape: bf16[32,128], index: 2, kind: input, shape index: {}]
  %s3 = inlined_call_operand.vmem [shape: f32[1,128], index: 3, kind: input, shape index: {}]
  %s4 = inlined_call_operand.vmem [shape: f32[1,32], index: 4, kind: input, shape index: {}]
  %s5 = inlined_call_operand.vmem [shape: f32[32,1], index: 5, kind: input, shape index: {}]
  %s6 = inlined_call_operand.<no memory space> [shape: f32[1,1], index: 6, kind: input, shape index: {}]
  %s7 = inlined_call_operand.vmem [shape: f32[8,1], index: 7, kind: output, shape index: {}]
  %s8 = sld [smem:[#allocation0]]
  $region69: #{spam_gru_forward.1} parent=0
    _
  %s10 = ssub.s32 1, %s8
  %s11 = scalar_select 0, %s10, %s8
  %v12 = vstv %s6
  %13 = vst [vmem:[#allocation4] sm:$0x1] %v12
  loop: start=0, step=1, limit=4
  $region2: #{spam_gru_forward.1} parent=0 // loop_pre_header
    _
  $region3: #{spam_gru_forward.1} parent=0 // loop_header
    %s15 = sphi 0, %s19
    %p16 = scmp.ge.s32.totalorder %s15, 4
    %s25 = sphi 0, %s27
    %s28 = sphi 0, %s25
    %s29 = sphi 0, %s28
    %s45 = sphi 0, %s29
    %s49 = sphi 0, %s49
    %s51 = sphi 0, %s49
    %s52 = sphi 0, %s51
    %s66 = sphi 0, %s52
    %s70 = sphi 0, %s70
    %s72 = sphi 0, %s70
    %s73 = sphi 0, %s72
    %s87 = sphi 0, %s73
    %s91 = sphi 0, %s91
    %s93 = sphi 0, %s91
    %s94 = sphi 0, %s93
    %s108 = sphi 0, %s94
    %s112 = sphi 0, %s112
    %s114 = sphi 0, %s112
    %s115 = sphi 0, %s114
    %s129 = sphi 0, %s115
    %s133 = sphi 0, %s133
    %s135 = sphi 0, %s133
    %s136 = sphi 0, %s135
    %s150 = sphi 0, %s136
    %s154 = sphi 0, %s154
    %s156 = sphi 0, %s154
    %s157 = sphi 0, %s156
    %s171 = sphi 0, %s157
    %s175 = sphi 0, %s175
    %s177 = sphi 0, %s175
    %s178 = sphi 0, %s177
    %s192 = sphi 0, %s178
  $region4: #{spam_gru_forward.1} parent=0 // loop_header_branch
    %18 = sbr.rel (%p16) target = $region8
  $region5: #{spam_gru_forward.1} parent=0 // loop_body
    %s20 = ssub.s32 %s15, 1
    %s21 = ssub.s32 %s15, 2
    %s22 = sadd.s32 %s15, 1
    %s23 = ssub.s32 %s15, %s22
    %p24 = scmp.eq.s32.totalorder %s23, 0
    %s26 = sadd.s32 %s25, 1
    %s27 = scalar_select %p24, %s25, %s26
    %p30 = pneg %p24
    %p31 = scmp.eq.s32.totalorder %s15, 1
    %p32 = por %p30, %p31
    %p33 = scmp.ne.s32.totalorder %s25, %s28
    %p34 = scmp.eq.s32.totalorder %s15, 0
    %p35 = por %p33, %p34
    %p36 = scmp.ne.s32.totalorder %s25, %s28
    %p37 = scmp.eq.s32.totalorder %s20, 1
    %p38 = por %p36, %p37
    %p39 = scmp.ne.s32.totalorder %s28, %s29
    %p40 = scmp.eq.s32.totalorder %s20, 0
    %p41 = por %p39, %p40
    %p42 = scmp.ne.s32.totalorder %s28, %s29
    %p43 = scmp.eq.s32.totalorder %s21, 1
    %p44 = por %p42, %p43
    %p46 = scmp.ne.s32.totalorder %s29, %s45
    %p47 = scmp.eq.s32.totalorder %s21, 0
    %p48 = por %p46, %p47
    %s50 = sadd.s32 %s49, 1
    %p53 = scmp.eq.s32.totalorder %s15, 1
    %p54 = scmp.ne.s32.totalorder %s49, %s51
    %p55 = scmp.eq.s32.totalorder %s15, 0
    %p56 = por %p54, %p55
    %p57 = scmp.ne.s32.totalorder %s49, %s51
    %p58 = scmp.eq.s32.totalorder %s20, 1
    %p59 = por %p57, %p58
    %p60 = scmp.ne.s32.totalorder %s51, %s52
    %p61 = scmp.eq.s32.totalorder %s20, 0
    %p62 = por %p60, %p61
    %p63 = scmp.ne.s32.totalorder %s51, %s52
    %p64 = scmp.eq.s32.totalorder %s21, 1
    %p65 = por %p63, %p64
    %p67 = scmp.ne.s32.totalorder %s52, %s66
    %p68 = scmp.eq.s32.totalorder %s21, 0
    %p69 = por %p67, %p68
    %s71 = sadd.s32 %s70, 1
    %p74 = scmp.eq.s32.totalorder %s15, 1
    %p75 = scmp.ne.s32.totalorder %s70, %s72
    %p76 = scmp.eq.s32.totalorder %s15, 0
    %p77 = por %p75, %p76
    %p78 = scmp.ne.s32.totalorder %s70, %s72
    %p79 = scmp.eq.s32.totalorder %s20, 1
    %p80 = por %p78, %p79
    %p81 = scmp.ne.s32.totalorder %s72, %s73
    %p82 = scmp.eq.s32.totalorder %s20, 0
    %p83 = por %p81, %p82
    %p84 = scmp.ne.s32.totalorder %s72, %s73
    %p85 = scmp.eq.s32.totalorder %s21, 1
    %p86 = por %p84, %p85
    %p88 = scmp.ne.s32.totalorder %s73, %s87
    %p89 = scmp.eq.s32.totalorder %s21, 0
    %p90 = por %p88, %p89
    %s92 = sadd.s32 %s91, 1
    %p95 = scmp.eq.s32.totalorder %s15, 1
    %p96 = scmp.ne.s32.totalorder %s91, %s93
    %p97 = scmp.eq.s32.totalorder %s15, 0
    %p98 = por %p96, %p97
    %p99 = scmp.ne.s32.totalorder %s91, %s93
    %p100 = scmp.eq.s32.totalorder %s20, 1
    %p101 = por %p99, %p100
    %p102 = scmp.ne.s32.totalorder %s93, %s94
    %p103 = scmp.eq.s32.totalorder %s20, 0
    %p104 = por %p102, %p103
    %p105 = scmp.ne.s32.totalorder %s93, %s94
    %p106 = scmp.eq.s32.totalorder %s21, 1
    %p107 = por %p105, %p106
    %p109 = scmp.ne.s32.totalorder %s94, %s108
    %p110 = scmp.eq.s32.totalorder %s21, 0
    %p111 = por %p109, %p110
    %s113 = sadd.s32 %s112, 1
    %p116 = scmp.eq.s32.totalorder %s15, 1
    %p117 = scmp.ne.s32.totalorder %s112, %s114
    %p118 = scmp.eq.s32.totalorder %s15, 0
    %p119 = por %p117, %p118
    %p120 = scmp.ne.s32.totalorder %s112, %s114
    %p121 = scmp.eq.s32.totalorder %s20, 1
    %p122 = por %p120, %p121
    %p123 = scmp.ne.s32.totalorder %s114, %s115
    %p124 = scmp.eq.s32.totalorder %s20, 0
    %p125 = por %p123, %p124
    %p126 = scmp.ne.s32.totalorder %s114, %s115
    %p127 = scmp.eq.s32.totalorder %s21, 1
    %p128 = por %p126, %p127
    %p130 = scmp.ne.s32.totalorder %s115, %s129
    %p131 = scmp.eq.s32.totalorder %s21, 0
    %p132 = por %p130, %p131
    %s134 = sadd.s32 %s133, 1
    %p137 = scmp.eq.s32.totalorder %s15, 1
    %p138 = scmp.ne.s32.totalorder %s133, %s135
    %p139 = scmp.eq.s32.totalorder %s15, 0
    %p140 = por %p138, %p139
    %p141 = scmp.ne.s32.totalorder %s133, %s135
    %p142 = scmp.eq.s32.totalorder %s20, 1
    %p143 = por %p141, %p142
    %p144 = scmp.ne.s32.totalorder %s135, %s136
    %p145 = scmp.eq.s32.totalorder %s20, 0
    %p146 = por %p144, %p145
    %p147 = scmp.ne.s32.totalorder %s135, %s136
    %p148 = scmp.eq.s32.totalorder %s21, 1
    %p149 = por %p147, %p148
    %p151 = scmp.ne.s32.totalorder %s136, %s150
    %p152 = scmp.eq.s32.totalorder %s21, 0
    %p153 = por %p151, %p152
    %s155 = sadd.s32 %s154, 1
    %p158 = scmp.eq.s32.totalorder %s15, 1
    %p159 = scmp.ne.s32.totalorder %s154, %s156
    %p160 = scmp.eq.s32.totalorder %s15, 0
    %p161 = por %p159, %p160
    %p162 = scmp.ne.s32.totalorder %s154, %s156
    %p163 = scmp.eq.s32.totalorder %s20, 1
    %p164 = por %p162, %p163
    %p165 = scmp.ne.s32.totalorder %s156, %s157
    %p166 = scmp.eq.s32.totalorder %s20, 0
    %p167 = por %p165, %p166
    %p168 = scmp.ne.s32.totalorder %s156, %s157
    %p169 = scmp.eq.s32.totalorder %s21, 1
    %p170 = por %p168, %p169
    %p172 = scmp.ne.s32.totalorder %s157, %s171
    %p173 = scmp.eq.s32.totalorder %s21, 0
    %p174 = por %p172, %p173
    %s176 = sadd.s32 %s175, 1
    %p179 = scmp.eq.s32.totalorder %s15, 1
    %p180 = scmp.ne.s32.totalorder %s175, %s177
    %p181 = scmp.eq.s32.totalorder %s15, 0
    %p182 = por %p180, %p181
    %p183 = scmp.ne.s32.totalorder %s175, %s177
    %p184 = scmp.eq.s32.totalorder %s20, 1
    %p185 = por %p183, %p184
    %p186 = scmp.ne.s32.totalorder %s177, %s178
    %p187 = scmp.eq.s32.totalorder %s20, 0
    %p188 = por %p186, %p187
    %p189 = scmp.ne.s32.totalorder %s177, %s178
    %p190 = scmp.eq.s32.totalorder %s21, 1
    %p191 = por %p189, %p190
    %p193 = scmp.ne.s32.totalorder %s178, %s192
    %p194 = scmp.eq.s32.totalorder %s21, 0
    %p195 = por %p193, %p194
    %p196 = scmp.le.s32.totalorder 1, %s15
    %p197 = scmp.lt.s32.totalorder %s15, 3
    %p198 = pnand %p196, %p197
    %p199 = pneg %p198
    // Predicated region
    $region9: #{spam_gru_forward.1} parent=5 // pred_check
      _
    $region10: #{spam_gru_forward.1} parent=5 // pred_check_branch
      %201 = sbr.rel (%p198) target = $region12
    $region11: #{spam_gru_forward.1} parent=5 // pred_region
      %s202 = ssub.s32 %s15, 1
      // Predicated region
      $region13: #{spam_gru_forward.1} parent=11 // pred_check
        %p203 = pneg %p62
      $region14: #{spam_gru_forward.1} parent=11 // pred_check_branch
        %205 = sbr.rel (%p203) target = $region16
      $region15: #{spam_gru_forward.1} parent=11 // pred_region
        _
      $region16: #{spam_gru_forward.1} parent=11 // pred_fallthru
        _
      // Predicated region
      $region17: #{spam_gru_forward.1} parent=11 // pred_check
        %p206 = pneg %p83
      $region18: #{spam_gru_forward.1} parent=11 // pred_check_branch
        %208 = sbr.rel (%p206) target = $region20
      $region19: #{spam_gru_forward.1} parent=11 // pred_region
        _
      $region20: #{spam_gru_forward.1} parent=11 // pred_fallthru
        _
      // Predicated region
      $region21: #{spam_gru_forward.1} parent=11 // pred_check
        %p209 = pneg %p104
      $region22: #{spam_gru_forward.1} parent=11 // pred_check_branch
        %211 = sbr.rel (%p209) target = $region24
      $region23: #{spam_gru_forward.1} parent=11 // pred_region
        _
      $region24: #{spam_gru_forward.1} parent=11 // pred_fallthru
        _
      // Predicated region
      $region25: #{spam_gru_forward.1} parent=11 // pred_check
        %p212 = pneg %p125
      $region26: #{spam_gru_forward.1} parent=11 // pred_check_branch
        %214 = sbr.rel (%p212) target = $region28
      $region27: #{spam_gru_forward.1} parent=11 // pred_region
        _
      $region28: #{spam_gru_forward.1} parent=11 // pred_fallthru
        _
      // Predicated region
      $region29: #{spam_gru_forward.1} parent=11 // pred_check
        %p215 = pneg %p146
      $region30: #{spam_gru_forward.1} parent=11 // pred_check_branch
        %217 = sbr.rel (%p215) target = $region32
      $region31: #{spam_gru_forward.1} parent=11 // pred_region
        _
      $region32: #{spam_gru_forward.1} parent=11 // pred_fallthru
        _
      // Predicated region
      $region33: #{spam_gru_forward.1} parent=11 // pred_check
        %p218 = pneg %p167
      $region34: #{spam_gru_forward.1} parent=11 // pred_check_branch
        %220 = sbr.rel (%p218) target = $region36
      $region35: #{spam_gru_forward.1} parent=11 // pred_region
        _
      $region36: #{spam_gru_forward.1} parent=11 // pred_fallthru
        _
    $region12: #{spam_gru_forward.1} parent=5 // pred_fallthru
      _
    %p221 = scmp.lt.s32.totalorder %s15, 2
    // Predicated region
    $region37: #{spam_gru_forward.1} parent=5 // pred_check
      %p222 = pneg %p221
    $region38: #{spam_gru_forward.1} parent=5 // pred_check_branch
      %224 = sbr.rel (%p222) target = $region40
    $region39: #{spam_gru_forward.1} parent=5 // pred_region
      // Predicated region
      $region41: #{spam_gru_forward.1} parent=39 // pred_check
        %p225 = pneg %p35
      $region42: #{spam_gru_forward.1} parent=39 // pred_check_branch
        %227 = sbr.rel (%p225) target = $region44
      $region43: #{spam_gru_forward.1} parent=39 // pred_region
        %s228 = smul.u32 4, %s15
        %p229 = scmp.lt.s32.totalorder %s228, 7
        %s230 = scalar_select %p229, %s228, 7
        %s231 = smul.addr %s230, 4
        %s232 = scalar_lea.vmem %s0, %s231
        %s233 = smul.u32 4, %s15
      $region44: #{spam_gru_forward.1} parent=39 // pred_fallthru
        _
    $region40: #{spam_gru_forward.1} parent=5 // pred_fallthru
      _
    %p234 = scmp.le.s32.totalorder 1, %s15
    %p235 = scmp.lt.s32.totalorder %s15, 3
    %p236 = pnand %p234, %p235
    %p237 = pneg %p236
    // Predicated region
    $region45: #{spam_gru_forward.1} parent=5 // pred_check
      _
    $region46: #{spam_gru_forward.1} parent=5 // pred_check_branch
      %239 = sbr.rel (%p236) target = $region48
    $region47: #{spam_gru_forward.1} parent=5 // pred_region
      %s240 = ssub.s32 %s15, 1
      %s241 = smul.u32 4, %s20
      %p242 = scmp.lt.s32.totalorder %s241, 7
      %s243 = scalar_select %p242, %s241, 7
      %s244 = smul.addr %s243, 4
      %s245 = scalar_lea.vmem %s0, %s244
      %p246 = pneg %p41
      %p247 = pneg %p38
      %p248 = pneg %p62
      %p249 = pneg %p59
      %p250 = pneg %p83
      %p251 = pneg %p80
      %p252 = pneg %p104
      %p253 = pneg %p101
      %p254 = pneg %p125
      %p255 = pneg %p122
      %p256 = pneg %p146
      %p257 = pneg %p143
      %p258 = pneg %p167
      %p259 = pneg %p164
      %p260 = pneg %p188
      %p261 = pneg %p185
      %s262 = smul.u32 4, %s20
      %p263 = scmp.lt.s32.totalorder %s262, 7
      %s264 = scalar_select %p263, %s262, 7
      %s265 = smul.addr %s264, 4
      %s266 = scalar_lea.vmem %s0, %s265
      %s267 = smul.u32 4, %s20
      %p269 = scmp.eq.s32.totalorder %s20, 0
      // Predicated region
      $region49: #{spam_gru_forward.1} parent=47 // pred_check
        %p270 = pneg %p269
      $region50: #{spam_gru_forward.1} parent=47 // pred_check_branch
        %272 = sbr.rel (%p270) target = $region52
      $region51: #{spam_gru_forward.1} parent=47 // pred_region
        %vm273 = vcmask 261120
        %274 = vst.msk [vmem:[#allocation2] sm:$0xff] %vm273, 0.0
      $region52: #{spam_gru_forward.1} parent=47 // pred_fallthru
        _
      %v275 = vld [vmem:[%s266] sm:$0xf]
      %v276 = vld [vmem:[%s266 + $0x4] sm:$0xf]
      %v277 = vld [vmem:[%s266 + $0x8] sm:$0xf]
      %v278 = vld [vmem:[%s266 + $0xc] sm:$0xf]
      %v279 = vld [vmem:[%s1] sm:$0xf]
      %v280 = vld [vmem:[%s1 + $0x4] sm:$0xf]
      %v281 = vld [vmem:[%s1 + $0x8] sm:$0xf]
      %v282 = vld [vmem:[%s1 + $0xc] sm:$0xf]
      %v283 = vld [vmem:[%s3] sm:$0x1]
      %v285 = vlaneseq
      %v286 = vshrl.u32 %v285, 7
      %v287 = vsub.s32 0, %v286
      %v288 = vrot.slane %v283, %v287
      %v294 = vunpack.c.l.b16 %v275
      %v295 = vunpack.c.l.b16 %v276
      %v296 = vunpack.c.l.b16 %v277
      %v297 = vunpack.c.l.b16 %v278
      %v298 = vpack.c.b16 %v295, %v294
      %v299 = vpack.c.b16 %v297, %v296
      %v304 = vunpack.c.l.b16 %v279
      %v305 = vunpack.c.l.b16 %v280
      %v306 = vunpack.c.l.b16 %v281
      %v307 = vunpack.c.l.b16 %v282
      %v308 = vpack.c.b16 %v305, %v304
      %v309 = vpack.c.b16 %v307, %v306
      %vm312 = vcmask 261120
      %v314 = vsel %vm312, %v298, 0
      %v317 = vsel %vm312, %v299, 0
      %319 = vmatprep.subr.bf16.mxu0 0
      %320 = vmatpush1.bf16.msra.mxu0 0
      %321 = vmatprep.subr.bf16.mxu0 0
      %322 = vmatpush1.bf16.msra.mxu0 0
      %323 = vmatprep.subr.bf16.mxu0 0
      %324 = vmatpush1.bf16.msra.mxu0 0
      %325 = vmatprep.subr.bf16.mxu0 0
      %326 = vmatpush1.bf16.msra.mxu0 0
      %327 = vmatprep.subr.bf16.mxu0 0
      %328 = vmatpush1.bf16.msra.mxu0 0
      %329 = vmatprep.subr.bf16.mxu0 0
      %330 = vmatpush1.bf16.msra.mxu0 0
      %331 = vmatprep.subr.bf16.mxu0 0
      %332 = vmatpush1.bf16.msra.mxu0 %v309
      %333 = vmatprep.subr.bf16.mxu0 0
      %334 = vmatpush1.bf16.msra.mxu0 %v308
      %335 = vmatprep.subr.bf16.mxu0 0
      %336 = vmatpush2.bf16.msra.mxu0 0
      %337 = vmatprep.subr.bf16.mxu0 0
      %338 = vmatpush2.bf16.msra.mxu0 0
      %339 = vmatprep.subr.bf16.mxu0 0
      %340 = vmatpush2.bf16.msra.mxu0 0
      %341 = vmatprep.subr.bf16.mxu0 0
      %342 = vmatpush2.bf16.msra.mxu0 0
      %343 = vmatprep.subr.bf16.mxu0 0
      %344 = vmatpush2.bf16.msra.mxu0 0
      %345 = vmatprep.subr.bf16.mxu0 0
      %346 = vmatpush2.bf16.msra.mxu0 0
      %347 = vmatprep.subr.bf16.mxu0 0
      %348 = vmatpush2.bf16.msra.mxu0 0
      %349 = vmatprep.subr.bf16.mxu0 0
      %350 = vmatpush2.bf16.msra.mxu0 0
      %351 = vmatprep.mubr.bf16.mxu0 0
      %352 = vmatmul.mubr.bf16.gmra.mxu0 %v314
      %v353 = vpop.f32.mrf.mxu0
      %v354 = vadd.f32 %v288, %v353
      %v355 = vpop.f32.mrf.mxu0
      %v356 = vpop.f32.mrf.mxu0
      %v357 = vadd.f32 %v288, %v356
      %v358 = vpop.f32.mrf.mxu0
      %359 = vmatprep.mubr.bf16.mxu0 0
      %360 = vmatmul.mubr.bf16.gmra.mxu0 %v317
      %v361 = vpop.f32.mrf.mxu0
      %v362 = vadd.f32 %v288, %v361
      %v363 = vpop.f32.mrf.mxu0
      %v364 = vpop.f32.mrf.mxu0
      %v365 = vadd.f32 %v288, %v364
      %v366 = vpop.f32.mrf.mxu0
      %367 = vdwg.mxu0
      %368 = vst [vmem:[#allocation3] sm:$0xff] %v354
      %369 = vst [vmem:[#allocation3 + $0x8] sm:$0xff] %v357
      %370 = vst [vmem:[#allocation3 + $0x10] sm:$0xff] %v362
      %371 = vst [vmem:[#allocation3 + $0x18] sm:$0xff] %v365
      %v372 = vld [vmem:[%s2] sm:$0xf]
      %v373 = vld [vmem:[%s2 + $0x4] sm:$0xf]
      %v374 = vld [vmem:[%s2 + $0x8] sm:$0xf]
      %v375 = vld [vmem:[%s2 + $0xc] sm:$0xf]
      %v376 = vld [vmem:[%s4] sm:$0x1]
      %v378 = vlaneseq
      %v379 = vshrl.u32 %v378, 7
      %v380 = vsub.s32 0, %v379
      %v381 = vrot.slane %v376, %v380
      %v382 = vld [vmem:[#allocation2] sm:$0xff]
      %v383 = vld [vmem:[#allocation3] sm:$0xff]
      %v384 = vpack.c.bf16 %v382, %v382
      %v389 = vunpack.c.l.b16 %v372
      %v390 = vunpack.c.l.b16 %v373
      %v391 = vunpack.c.l.b16 %v374
      %v392 = vunpack.c.l.b16 %v375
      %v393 = vpack.c.b16 %v390, %v389
      %v394 = vpack.c.b16 %v392, %v391
      %v398 = vsel %vm312, %v384, 0
      %400 = vmatprep.subr.bf16.mxu0 0
      %401 = vmatpush1.bf16.msra.mxu0 0
      %402 = vmatprep.subr.bf16.mxu0 0
      %403 = vmatpush1.bf16.msra.mxu0 0
      %404 = vmatprep.subr.bf16.mxu0 0
      %405 = vmatpush1.bf16.msra.mxu0 0
      %406 = vmatprep.subr.bf16.mxu0 0
      %407 = vmatpush1.bf16.msra.mxu0 0
      %408 = vmatprep.subr.bf16.mxu0 0
      %409 = vmatpush1.bf16.msra.mxu0 0
      %410 = vmatprep.subr.bf16.mxu0 0
      %411 = vmatpush1.bf16.msra.mxu0 0
      %412 = vmatprep.subr.bf16.mxu0 0
      %413 = vmatpush1.bf16.msra.mxu0 %v394
      %414 = vmatprep.subr.bf16.mxu0 0
      %415 = vmatpush1.bf16.msra.mxu0 %v393
      %416 = vmatprep.subr.bf16.mxu0 0
      %417 = vmatpush2.bf16.msra.mxu0 0
      %418 = vmatprep.subr.bf16.mxu0 0
      %419 = vmatpush2.bf16.msra.mxu0 0
      %420 = vmatprep.subr.bf16.mxu0 0
      %421 = vmatpush2.bf16.msra.mxu0 0
      %422 = vmatprep.subr.bf16.mxu0 0
      %423 = vmatpush2.bf16.msra.mxu0 0
      %424 = vmatprep.subr.bf16.mxu0 0
      %425 = vmatpush2.bf16.msra.mxu0 0
      %426 = vmatprep.subr.bf16.mxu0 0
      %427 = vmatpush2.bf16.msra.mxu0 0
      %428 = vmatprep.subr.bf16.mxu0 0
      %429 = vmatpush2.bf16.msra.mxu0 0
      %430 = vmatprep.subr.bf16.mxu0 0
      %431 = vmatpush2.bf16.msra.mxu0 0
      %432 = vmatprep.mubr.bf16.mxu0 0
      %433 = vmatmul.mubr.bf16.gmra.mxu0 %v398
      %v434 = vpop.f32.mrf.mxu0
      %v435 = vadd.f32 0.0, %v434
      %v436 = vpop.f32.mrf.mxu0
      %v437 = vpop.f32.mrf.mxu0
      %v438 = vpop.f32.mrf.mxu0
      %439 = vdwg.mxu0
      %v440 = vadd.f32 %v383, %v435
      %v441 = vxor.u32 %v440, 2147483648
      %v442 = vmul.f32 %v441, 1.442695
      %v443 = vpow.pop %v442
      %v444 = vadd.f32 %v443, 1.0
      %v445 = vrcp.pop %v444
      %v446 = vmul.f32 1.0, %v445
      %447 = vrot.lane.b32.xlu0 %v381, 64
      %v448 = vpop.permute.xlu0 %447
      %v450 = vadd.f32 %v435, %v448
      %452 = vrot.lane.b32.xlu0 %v450, 64
      %v453 = vpop.permute.xlu0 %452
      %v455 = vmul.f32 %v446, %v453
      %457 = vrot.lane.b32.xlu0 %v455, 64
      %v458 = vpop.permute.xlu0 %457
      %v460 = vadd.f32 %v383, %v458
      %v461 = vtanh.pop %v460
      %463 = vrot.lane.b32.xlu0 %v461, 64
      %v464 = vpop.permute.xlu0 %463
      %v466 = vsub.f32 %v382, %v464
      %468 = vrot.lane.b32.xlu0 %v466, 32
      %v469 = vpop.permute.xlu0 %468
      %v471 = vmul.f32 %v446, %v469
      %473 = vrot.lane.b32.xlu0 %v471, 32
      %v474 = vpop.permute.xlu0 %473
      %v476 = vadd.f32 %v461, %v474
      %s477 = scalar_lea.vmem [#allocation3], 8
      %v478 = vld [vmem:[%s477] sm:$0xff]
      %v479 = vpack.c.bf16 %v476, %v476
      %481 = vrot.lane.b32.xlu0 %v479, 64
      %v482 = vpop.permute.xlu0 %481
      %v484 = vsel %vm312, %v482, 0
      %486 = vmatprep.subr.bf16.mxu0 0
      %487 = vmatpush1.bf16.msra.mxu0 0
      %488 = vmatprep.subr.bf16.mxu0 0
      %489 = vmatpush1.bf16.msra.mxu0 0
      %490 = vmatprep.subr.bf16.mxu0 0
      %491 = vmatpush1.bf16.msra.mxu0 0
      %492 = vmatprep.subr.bf16.mxu0 0
      %493 = vmatpush1.bf16.msra.mxu0 0
      %494 = vmatprep.subr.bf16.mxu0 0
      %495 = vmatpush1.bf16.msra.mxu0 0
      %496 = vmatprep.subr.bf16.mxu0 0
      %497 = vmatpush1.bf16.msra.mxu0 0
      %498 = vmatprep.subr.bf16.mxu0 0
      %499 = vmatpush1.bf16.msra.mxu0 %v394
      %500 = vmatprep.subr.bf16.mxu0 0
      %501 = vmatpush1.bf16.msra.mxu0 %v393
      %502 = vmatprep.subr.bf16.mxu0 0
      %503 = vmatpush2.bf16.msra.mxu0 0
      %504 = vmatprep.subr.bf16.mxu0 0
      %505 = vmatpush2.bf16.msra.mxu0 0
      %506 = vmatprep.subr.bf16.mxu0 0
      %507 = vmatpush2.bf16.msra.mxu0 0
      %508 = vmatprep.subr.bf16.mxu0 0
      %509 = vmatpush2.bf16.msra.mxu0 0
      %510 = vmatprep.subr.bf16.mxu0 0
      %511 = vmatpush2.bf16.msra.mxu0 0
      %512 = vmatprep.subr.bf16.mxu0 0
      %513 = vmatpush2.bf16.msra.mxu0 0
      %514 = vmatprep.subr.bf16.mxu0 0
      %515 = vmatpush2.bf16.msra.mxu0 0
      %516 = vmatprep.subr.bf16.mxu0 0
      %517 = vmatpush2.bf16.msra.mxu0 0
      %518 = vmatprep.mubr.bf16.mxu0 0
      %519 = vmatmul.mubr.bf16.gmra.mxu0 %v484
      %v520 = vpop.f32.mrf.mxu0
      %v521 = vadd.f32 0.0, %v520
      %v522 = vpop.f32.mrf.mxu0
      %v523 = vpop.f32.mrf.mxu0
      %v524 = vpop.f32.mrf.mxu0
      %525 = vdwg.mxu0
      %v526 = vadd.f32 %v478, %v521
      %v527 = vxor.u32 %v526, 2147483648
      %v528 = vmul.f32 %v527, 1.442695
      %v529 = vpow.pop %v528
      %v530 = vadd.f32 %v529, 1.0
      %v531 = vrcp.pop %v530
      %v532 = vmul.f32 1.0, %v531
      %v533 = vadd.f32 %v521, %v448
      %535 = vrot.lane.b32.xlu0 %v533, 64
      %v536 = vpop.permute.xlu0 %535
      %v538 = vmul.f32 %v532, %v536
      %540 = vrot.lane.b32.xlu0 %v538, 64
      %v541 = vpop.permute.xlu0 %540
      %v543 = vadd.f32 %v478, %v541
      %v544 = vtanh.pop %v543
      %v545 = vsub.f32 %v476, %v544
      %547 = vrot.lane.b32.xlu0 %v545, 96
      %v548 = vpop.permute.xlu0 %547
      %v550 = vmul.f32 %v532, %v548
      %552 = vrot.lane.b32.xlu0 %v550, 32
      %v553 = vpop.permute.xlu0 %552
      %v555 = vadd.f32 %v544, %v553
      %s556 = scalar_lea.vmem [#allocation3], 16
      %v557 = vld [vmem:[%s556] sm:$0xff]
      %v558 = vpack.c.bf16 %v555, %v555
      %560 = vrot.lane.b32.xlu0 %v558, 64
      %v561 = vpop.permute.xlu0 %560
      %v563 = vsel %vm312, %v561, 0
      %565 = vmatprep.subr.bf16.mxu0 0
      %566 = vmatpush1.bf16.msra.mxu0 0
      %567 = vmatprep.subr.bf16.mxu0 0
      %568 = vmatpush1.bf16.msra.mxu0 0
      %569 = vmatprep.subr.bf16.mxu0 0
      %570 = vmatpush1.bf16.msra.mxu0 0
      %571 = vmatprep.subr.bf16.mxu0 0
      %572 = vmatpush1.bf16.msra.mxu0 0
      %573 = vmatprep.subr.bf16.mxu0 0
      %574 = vmatpush1.bf16.msra.mxu0 0
      %575 = vmatprep.subr.bf16.mxu0 0
      %576 = vmatpush1.bf16.msra.mxu0 0
      %577 = vmatprep.subr.bf16.mxu0 0
      %578 = vmatpush1.bf16.msra.mxu0 %v394
      %579 = vmatprep.subr.bf16.mxu0 0
      %580 = vmatpush1.bf16.msra.mxu0 %v393
      %581 = vmatprep.subr.bf16.mxu0 0
      %582 = vmatpush2.bf16.msra.mxu0 0
      %583 = vmatprep.subr.bf16.mxu0 0
      %584 = vmatpush2.bf16.msra.mxu0 0
      %585 = vmatprep.subr.bf16.mxu0 0
      %586 = vmatpush2.bf16.msra.mxu0 0
      %587 = vmatprep.subr.bf16.mxu0 0
      %588 = vmatpush2.bf16.msra.mxu0 0
      %589 = vmatprep.subr.bf16.mxu0 0
      %590 = vmatpush2.bf16.msra.mxu0 0
      %591 = vmatprep.subr.bf16.mxu0 0
      %592 = vmatpush2.bf16.msra.mxu0 0
      %593 = vmatprep.subr.bf16.mxu0 0
      %594 = vmatpush2.bf16.msra.mxu0 0
      %595 = vmatprep.subr.bf16.mxu0 0
      %596 = vmatpush2.bf16.msra.mxu0 0
      %597 = vmatprep.mubr.bf16.mxu0 0
      %598 = vmatmul.mubr.bf16.gmra.mxu0 %v563
      %v599 = vpop.f32.mrf.mxu0
      %v600 = vadd.f32 0.0, %v599
      %v601 = vpop.f32.mrf.mxu0
      %v602 = vpop.f32.mrf.mxu0
      %v603 = vpop.f32.mrf.mxu0
      %604 = vdwg.mxu0
      %v605 = vadd.f32 %v557, %v600
      %v606 = vxor.u32 %v605, 2147483648
      %v607 = vmul.f32 %v606, 1.442695
      %v608 = vpow.pop %v607
      %v609 = vadd.f32 %v608, 1.0
      %v610 = vrcp.pop %v609
      %v611 = vmul.f32 1.0, %v610
      %v612 = vadd.f32 %v600, %v448
      %614 = vrot.lane.b32.xlu0 %v612, 64
      %v615 = vpop.permute.xlu0 %614
      %v617 = vmul.f32 %v611, %v615
      %619 = vrot.lane.b32.xlu0 %v617, 64
      %v620 = vpop.permute.xlu0 %619
      %v622 = vadd.f32 %v557, %v620
      %v623 = vtanh.pop %v622
      %v624 = vsub.f32 %v555, %v623
      %626 = vrot.lane.b32.xlu0 %v624, 96
      %v627 = vpop.permute.xlu0 %626
      %v629 = vmul.f32 %v611, %v627
      %631 = vrot.lane.b32.xlu0 %v629, 32
      %v632 = vpop.permute.xlu0 %631
      %v634 = vadd.f32 %v623, %v632
      %s635 = scalar_lea.vmem [#allocation3], 24
      %v636 = vld [vmem:[%s635] sm:$0xff]
      %v637 = vpack.c.bf16 %v634, %v634
      %639 = vrot.lane.b32.xlu0 %v637, 64
      %v640 = vpop.permute.xlu0 %639
      %v642 = vsel %vm312, %v640, 0
      %644 = vmatprep.subr.bf16.mxu0 0
      %645 = vmatpush1.bf16.msra.mxu0 0
      %646 = vmatprep.subr.bf16.mxu0 0
      %647 = vmatpush1.bf16.msra.mxu0 0
      %648 = vmatprep.subr.bf16.mxu0 0
      %649 = vmatpush1.bf16.msra.mxu0 0
      %650 = vmatprep.subr.bf16.mxu0 0
      %651 = vmatpush1.bf16.msra.mxu0 0
      %652 = vmatprep.subr.bf16.mxu0 0
      %653 = vmatpush1.bf16.msra.mxu0 0
      %654 = vmatprep.subr.bf16.mxu0 0
      %655 = vmatpush1.bf16.msra.mxu0 0
      %656 = vmatprep.subr.bf16.mxu0 0
      %657 = vmatpush1.bf16.msra.mxu0 %v394
      %658 = vmatprep.subr.bf16.mxu0 0
      %659 = vmatpush1.bf16.msra.mxu0 %v393
      %660 = vmatprep.subr.bf16.mxu0 0
      %661 = vmatpush2.bf16.msra.mxu0 0
      %662 = vmatprep.subr.bf16.mxu0 0
      %663 = vmatpush2.bf16.msra.mxu0 0
      %664 = vmatprep.subr.bf16.mxu0 0
      %665 = vmatpush2.bf16.msra.mxu0 0
      %666 = vmatprep.subr.bf16.mxu0 0
      %667 = vmatpush2.bf16.msra.mxu0 0
      %668 = vmatprep.subr.bf16.mxu0 0
      %669 = vmatpush2.bf16.msra.mxu0 0
      %670 = vmatprep.subr.bf16.mxu0 0
      %671 = vmatpush2.bf16.msra.mxu0 0
      %672 = vmatprep.subr.bf16.mxu0 0
      %673 = vmatpush2.bf16.msra.mxu0 0
      %674 = vmatprep.subr.bf16.mxu0 0
      %675 = vmatpush2.bf16.msra.mxu0 0
      %676 = vmatprep.mubr.bf16.mxu0 0
      %677 = vmatmul.mubr.bf16.gmra.mxu0 %v642
      %v678 = vpop.f32.mrf.mxu0
      %v679 = vadd.f32 0.0, %v678
      %v680 = vpop.f32.mrf.mxu0
      %v681 = vpop.f32.mrf.mxu0
      %v682 = vpop.f32.mrf.mxu0
      %683 = vdwg.mxu0
      %v684 = vadd.f32 %v636, %v679
      %v685 = vxor.u32 %v684, 2147483648
      %v686 = vmul.f32 %v685, 1.442695
      %v687 = vpow.pop %v686
      %v688 = vadd.f32 %v687, 1.0
      %v689 = vrcp.pop %v688
      %v690 = vmul.f32 1.0, %v689
      %v691 = vadd.f32 %v679, %v448
      %693 = vrot.lane.b32.xlu0 %v691, 64
      %v694 = vpop.permute.xlu0 %693
      %v696 = vmul.f32 %v690, %v694
      %698 = vrot.lane.b32.xlu0 %v696, 64
      %v699 = vpop.permute.xlu0 %698
      %v701 = vadd.f32 %v636, %v699
      %v702 = vtanh.pop %v701
      %v703 = vsub.f32 %v634, %v702
      %705 = vrot.lane.b32.xlu0 %v703, 96
      %v706 = vpop.permute.xlu0 %705
      %v708 = vmul.f32 %v690, %v706
      %710 = vrot.lane.b32.xlu0 %v708, 32
      %v711 = vpop.permute.xlu0 %710
      %v713 = vadd.f32 %v702, %v711
      %715 = vrot.lane.b32.xlu0 %v713, 64
      %v716 = vpop.permute.xlu0 %715
      %718 = vst.msk [vmem:[#allocation2] sm:$0xff] %vm312, %v716
      %p719 = scmp.eq.s32.totalorder %s20, 1
      // Predicated region
      $region53: #{spam_gru_forward.1} parent=47 // pred_check
        %p720 = pneg %p719
      $region54: #{spam_gru_forward.1} parent=47 // pred_check_branch
        %722 = sbr.rel (%p720) target = $region56
      $region55: #{spam_gru_forward.1} parent=47 // pred_region
        %v723 = vld [vmem:[#allocation2] sm:$0xff]
        %v724 = vld [vmem:[%s5] sm:$0xff]
        %v725 = vld [vmem:[%s5 + $0x8] sm:$0xff]
        %v726 = vld [vmem:[%s5 + $0x10] sm:$0xff]
        %v727 = vld [vmem:[%s5 + $0x18] sm:$0xff]
        %v728 = vld [vmem:[#allocation4] sm:$0x1]
        %v730 = vlaneseq
        %v731 = vshrl.u32 %v730, 7
        %v732 = vsub.s32 0, %v731
        %v733 = vrot.slane %v728, %v732
        %v736 = vsel %vm312, %v723, 0
        %738 = vmatprep.subr.mxu0 0.0
        %739 = vmatpush1.msra.mxu0 0.0
        %740 = vmatprep.subr.mxu0 0.0
        %741 = vmatpush1.msra.mxu0 0.0
        %742 = vmatprep.subr.mxu0 0.0
        %743 = vmatpush1.msra.mxu0 0.0
        %744 = vmatprep.subr.mxu0 0.0
        %745 = vmatpush1.msra.mxu0 0.0
        %746 = vmatprep.subr.mxu0 0.0
        %747 = vmatpush1.msra.mxu0 0.0
        %748 = vmatprep.subr.mxu0 0.0
        %749 = vmatpush1.msra.mxu0 0.0
        %750 = vmatprep.subr.mxu0 0.0
        %751 = vmatpush1.msra.mxu0 0.0
        %752 = vmatprep.subr.mxu0 0.0
        %753 = vmatpush1.msra.mxu0 0.0
        %754 = vmatprep.subr.mxu0 0.0
        %755 = vmatpush1.msra.mxu0 0.0
        %756 = vmatprep.subr.mxu0 0.0
        %757 = vmatpush1.msra.mxu0 0.0
        %758 = vmatprep.subr.mxu0 0.0
        %759 = vmatpush1.msra.mxu0 0.0
        %760 = vmatprep.subr.mxu0 0.0
        %761 = vmatpush1.msra.mxu0 0.0
        %762 = vmatprep.subr.mxu0 0.0
        %763 = vmatpush1.msra.mxu0 %v727
        %764 = vmatprep.subr.mxu0 0.0
        %765 = vmatpush1.msra.mxu0 %v726
        %766 = vmatprep.subr.mxu0 0.0
        %767 = vmatpush1.msra.mxu0 %v725
        %768 = vmatprep.subr.mxu0 0.0
        %769 = vmatpush1.msra.mxu0 %v724
        %770 = vmatprep.subr.mxu0 0.0
        %771 = vmatpush2.msra.mxu0 0.0
        %772 = vmatprep.subr.mxu0 0.0
        %773 = vmatpush2.msra.mxu0 0.0
        %774 = vmatprep.subr.mxu0 0.0
        %775 = vmatpush2.msra.mxu0 0.0
        %776 = vmatprep.subr.mxu0 0.0
        %777 = vmatpush2.msra.mxu0 0.0
        %778 = vmatprep.subr.mxu0 0.0
        %779 = vmatpush2.msra.mxu0 0.0
        %780 = vmatprep.subr.mxu0 0.0
        %781 = vmatpush2.msra.mxu0 0.0
        %782 = vmatprep.subr.mxu0 0.0
        %783 = vmatpush2.msra.mxu0 0.0
        %784 = vmatprep.subr.mxu0 0.0
        %785 = vmatpush2.msra.mxu0 0.0
        %786 = vmatprep.subr.mxu0 0.0
        %787 = vmatpush2.msra.mxu0 0.0
        %788 = vmatprep.subr.mxu0 0.0
        %789 = vmatpush2.msra.mxu0 0.0
        %790 = vmatprep.subr.mxu0 0.0
        %791 = vmatpush2.msra.mxu0 0.0
        %792 = vmatprep.subr.mxu0 0.0
        %793 = vmatpush2.msra.mxu0 0.0
        %794 = vmatprep.subr.mxu0 0.0
        %795 = vmatpush2.msra.mxu0 0.0
        %796 = vmatprep.subr.mxu0 0.0
        %797 = vmatpush2.msra.mxu0 0.0
        %798 = vmatprep.subr.mxu0 0.0
        %799 = vmatpush2.msra.mxu0 0.0
        %800 = vmatprep.subr.mxu0 0.0
        %801 = vmatpush2.msra.mxu0 0.0
        %802 = vmatprep.mubr.f32.mxu0 0.0
        %803 = vmatmul.mubr.f32.gmra.mxu0 %v736
        %v804 = vpop.f32.mrf.mxu0
        %v805 = vadd.f32 %v733, %v804
        %v806 = vpop.f32.mrf.mxu0
        %807 = vdwg.mxu0
        %v808 = vxor.u32 %v805, 2147483648
        %v809 = vmul.f32 %v808, 1.442695
        %v810 = vpow.pop %v809
        %v811 = vadd.f32 %v810, 1.0
        %v812 = vrcp.pop %v811
        %v813 = vmul.f32 1.0, %v812
        %vm814 = vcmask 7168
        %815 = vst.msk [vmem:[%s7] sm:$0xff] %vm814, %v813
      $region56: #{spam_gru_forward.1} parent=47 // pred_fallthru
        _
      // Predicated region
      $region57: #{spam_gru_forward.1} parent=47 // pred_check
        %p816 = pneg %p185
      $region58: #{spam_gru_forward.1} parent=47 // pred_check_branch
        %818 = sbr.rel (%p816) target = $region60
      $region59: #{spam_gru_forward.1} parent=47 // pred_region
        _
      $region60: #{spam_gru_forward.1} parent=47 // pred_fallthru
        _
      // Predicated region
      $region61: #{spam_gru_forward.1} parent=47 // pred_check
        %p819 = pneg %p185
      $region62: #{spam_gru_forward.1} parent=47 // pred_check_branch
        %821 = sbr.rel (%p819) target = $region64
      $region63: #{spam_gru_forward.1} parent=47 // pred_region
        _
      $region64: #{spam_gru_forward.1} parent=47 // pred_fallthru
        _
    $region48: #{spam_gru_forward.1} parent=5 // pred_fallthru
      _
    %p822 = scmp.le.s32.totalorder 2, %s15
    // Predicated region
    $region65: #{spam_gru_forward.1} parent=5 // pred_check
      %p823 = pneg %p822
    $region66: #{spam_gru_forward.1} parent=5 // pred_check_branch
      %825 = sbr.rel (%p823) target = $region68
    $region67: #{spam_gru_forward.1} parent=5 // pred_region
      %s826 = ssub.s32 %s15, 2
    $region68: #{spam_gru_forward.1} parent=5 // pred_fallthru
      _
  $region6: #{spam_gru_forward.1} parent=0 // loop_footer
    %s19 = sadd.s32 1, %s15
  $region7: #{spam_gru_forward.1} parent=0 // loop_footer_branch
    %14 = sbr.rel target = $region3
  $region8: #{spam_gru_forward.1} parent=0 // loop_exit
    _

</llo_original>
